<compile_context>
chip_gen: v7x
topology: tpu7x:2x2x1
jax: 0.10.0
libtpu: 0.0.40
codegen_flags: <defaults>
</compile_context>

<pallas_src>
import functools

import jax
import jax.numpy as jnp
import numpy as np
from jax import lax
from jax.experimental import pallas as pl
from jax.experimental.pallas import tpu as pltpu

# Safe on v5e/v6e (128 MiB physical) and v7x (64 MiB physical); >> the 16 MiB
# default scope on v5e.  Raise toward ~96 MiB on v5e/v6e if using bigger tiles.
_VMEM_LIMIT_BYTES = 48 * 1024 * 1024


def _pick_tile(dim, target, align):
    """Largest multiple of `align` <= target that divides `dim`, else `dim`."""
    if dim <= target:
        return dim
    t = (target // align) * align
    while t >= align:
        if dim % t == 0:
            return t
        t -= align
    return dim  # fall back to full extent (no tiling on this axis)


# ----------------------------------------------------------------------------
# Lane-folding helpers: reduce a (tb, tv) tile to (tb, 128) with VPU ops
# (nchunks = tv // 128), or to (tb, 1) with a cross-lane reduce (nchunks == 0).
# Chunk slices are 128-lane aligned -> pure vreg selection, no relayout.
# ----------------------------------------------------------------------------
def _fold_max(a, nchunks):
    if nchunks == 0:
        return jnp.max(a, axis=-1, keepdims=True)
    out = a[:, :128]
    for c in range(1, nchunks):
        out = jnp.maximum(out, a[:, c * 128:(c + 1) * 128])
    return out


def _fold_sum(a, nchunks):
    if nchunks == 0:
        return jnp.sum(a, axis=-1, keepdims=True)
    out = a[:, :128]
    for c in range(1, nchunks):
        out = out + a[:, c * 128:(c + 1) * 128]
    return out


def _fold_sum_exp(a, m, nchunks):
    """sum over lane-chunks of exp(a - m); m has the accumulator width."""
    if nchunks == 0:
        return jnp.sum(jnp.exp(a - m), axis=-1, keepdims=True)
    out = jnp.exp(a[:, :128] - m)
    for c in range(1, nchunks):
        out = out + jnp.exp(a[:, c * 128:(c + 1) * 128] - m)
    return out


def _fold_sum_mul(a, b, nchunks):
    if nchunks == 0:
        return jnp.sum(a * b, axis=-1, keepdims=True)
    out = a[:, :128] * b[:, :128]
    for c in range(1, nchunks):
        sl = slice(c * 128, (c + 1) * 128)
        out = out + a[:, sl] * b[:, sl]
    return out


# ----------------------------------------------------------------------------
# Kernels
# ----------------------------------------------------------------------------
def _decoder_train_kernel(x_ref, mean_ref, logsigm_ref, eps_ref, wt_ref, b_ref,
                          o_ref, m_sc, l_sc, zx_sc, sx_sc, dv_sc, *, nchunks):
    """Training path, one (batch-tile, vocab-tile) grid step.

    Online LSE over vocab tiles with lane-dense accumulators;
    recon = lse * sum(x) - sum(z * x).
    """
    j = pl.program_id(1)

    @pl.when(j == 0)
    def _():
        m_sc[...] = jnp.full_like(m_sc, -jnp.inf)
        l_sc[...] = jnp.zeros_like(l_sc)
        zx_sc[...] = jnp.zeros_like(zx_sc)
        sx_sc[...] = jnp.zeros_like(sx_sc)
        # Reparameterization trick, computed once per batch tile (f32 VPU/EUP)
        # and cached (already cast for the MXU) for the whole vocab sweep.
        dv = jnp.exp(logsigm_ref[...]) * eps_ref[...] + mean_ref[...]
        dv_sc[...] = dv.astype(dv_sc.dtype)

    # z_tile = doc_vec @ W^T tile + b_tile.  wt arrives pre-transposed (T, tv)
    # and pre-cast -> natural MXU layout, f32 accumulation.
    z = jnp.dot(dv_sc[...], wt_ref[...], preferred_element_type=jnp.float32)
    z = z + b_ref[...]

    x = x_ref[...].astype(jnp.float32)

    # Online log-sum-exp across vocab tiles, per lane column.
    m_new = jnp.maximum(m_sc[...], _fold_max(z, nchunks))
    l_sc[...] = (jnp.exp(m_sc[...] - m_new) * l_sc[...]
                 + _fold_sum_exp(z, m_new, nchunks))
    m_sc[...] = m_new

    # Partial sums for recon = lse * sum_v x - sum_v z*x.
    zx_sc[...] += _fold_sum_mul(z, x, nchunks)
    sx_sc[...] += _fold_sum(x, nchunks)

    @pl.when(j == pl.num_programs(1) - 1)
    def _():
        # Single cross-lane combine per batch tile.
        m = m_sc[...]
        gm = jnp.max(m, axis=-1, keepdims=True)
        lse = gm + jnp.log(
            jnp.sum(l_sc[...] * jnp.exp(m - gm), axis=-1, keepdims=True))
        sx = jnp.sum(sx_sc[...], axis=-1, keepdims=True)
        zx = jnp.sum(zx_sc[...], axis=-1, keepdims=True)
        o_ref[...] = (lse * sx - zx).astype(o_ref.dtype)


def _decoder_eval_kernel(x_ref, mean_ref, wt_ref, b_ref, o_ref,
                         m_sc, l_sc, sx_sc, acc_sc, lse_sc, isx_sc, *, nchunks):
    """Eval path: linear -> softmax -> L1 to normalized counts.

    Vocab is streamed in tiles with two passes per batch tile:
      pass 0: online LSE (softmax denominator) + row sum(x)
      pass 1: accumulate |x / sum(x) - exp(z - lse)| lane partials
    Per-batch-tile lane-dense partials are written out; the wrapper sums them.
    """
    p = pl.program_id(1)
    j = pl.program_id(2)

    @pl.when((p == 0) & (j == 0))
    def _():
        m_sc[...] = jnp.full_like(m_sc, -jnp.inf)
        l_sc[...] = jnp.zeros_like(l_sc)
        sx_sc[...] = jnp.zeros_like(sx_sc)
        acc_sc[...] = jnp.zeros_like(acc_sc)

    z = jnp.dot(mean_ref[...].astype(wt_ref.dtype), wt_ref[...],
                preferred_element_type=jnp.float32)
    z = z + b_ref[...]
    x = x_ref[...].astype(jnp.float32)

    @pl.when(p == 0)
    def _():
        m_new = jnp.maximum(m_sc[...], _fold_max(z, nchunks))
        l_sc[...] = (jnp.exp(m_sc[...] - m_new) * l_sc[...]
                     + _fold_sum_exp(z, m_new, nchunks))
        m_sc[...] = m_new
        sx_sc[...] += _fold_sum(x, nchunks)

    @pl.when((p == 1) & (j == 0))
    def _():
        m = m_sc[...]
        gm = jnp.max(m, axis=-1, keepdims=True)
        lse_sc[...] = gm + jnp.log(
            jnp.sum(l_sc[...] * jnp.exp(m - gm), axis=-1, keepdims=True))
        # NOTE: an all-zero document row yields inf/NaN here, matching PyTorch.
        isx_sc[...] = pl.reciprocal(
            jnp.sum(sx_sc[...], axis=-1, keepdims=True), approx=False)

    @pl.when(p == 1)
    def _():
        probs = jnp.exp(z - lse_sc[...])
        temp = x * isx_sc[...]
        acc_sc[...] += _fold_sum(jnp.abs(temp - probs), nchunks)

    @pl.when((p == 1) & (j == pl.num_programs(2) - 1))
    def _():
        o_ref[...] = acc_sc[...].astype(o_ref.dtype)


# ----------------------------------------------------------------------------
# Wrappers
# ----------------------------------------------------------------------------
def _prep_common(doc_freq_vecs, mean, w_dec, b_dec, block_b, block_v, use_bf16):
    B, V = doc_freq_vecs.shape
    T = mean.shape[1]
    assert w_dec.shape == (V, T)
    tb = _pick_tile(B, block_b, 16)     # 16-aligned: native bf16 sublane tile
    tv = _pick_tile(V, block_v, 128)
    nchunks = tv // 128 if tv % 128 == 0 else 0
    acc_w = 128 if nchunks else 1
    mxu_dtype = jnp.bfloat16 if use_bf16 else jnp.float32
    # One-time (tiny, V*T) transpose + cast; streams half the weight bytes and
    # gives the MXU a natural-layout RHS.  In a training loop, keep the
    # parameter stored this way instead of re-deriving it per call.
    wt = jnp.transpose(w_dec).astype(mxu_dtype)           # (T, V)
    b2 = b_dec.reshape(1, V).astype(jnp.float32)
    return B, V, T, tb, tv, nchunks, acc_w, mxu_dtype, wt, b2


def decoder_forward_train(doc_freq_vecs, mean, logsigm, eps, w_dec, b_dec, *,
                          block_b=256, block_v=4096, use_bf16=True):
    """Returns recon of shape (B,), matching the PyTorch train path.

    w_dec is the nn.Linear weight in its native (n_input, n_topics) = (V, T)
    layout.  doc_freq_vecs may be passed in bf16 (exact for counts <= 256) to
    halve the dominant HBM stream; it is upcast to f32 in-kernel.
    """
    (B, V, T, tb, tv, nchunks, acc_w, mxu_dtype, wt, b2) = _prep_common(
        doc_freq_vecs, mean, w_dec, b_dec, block_b, block_v, use_bf16)

    out = pl.pallas_call(
        functools.partial(_decoder_train_kernel, nchunks=nchunks),
        out_shape=jax.ShapeDtypeStruct((B, 1), jnp.float32),
        grid_spec=pltpu.PrefetchScalarGridSpec(
            num_scalar_prefetch=0,
            grid=(B // tb, V // tv),
            in_specs=[
                pl.BlockSpec((tb, tv), lambda i, j: (i, j)),  # doc_freq_vecs
                pl.BlockSpec((tb, T), lambda i, j: (i, 0)),   # mean
                pl.BlockSpec((tb, T), lambda i, j: (i, 0)),   # logsigm
                pl.BlockSpec((tb, T), lambda i, j: (i, 0)),   # eps
                pl.BlockSpec((T, tv), lambda i, j: (0, j)),   # W^T (T, V) bf16
                pl.BlockSpec((1, tv), lambda i, j: (0, j)),   # bias (f32)
            ],
            out_specs=pl.BlockSpec((tb, 1), lambda i, j: (i, 0)),
            scratch_shapes=[
                pltpu.VMEM((tb, acc_w), jnp.float32),  # running max  (m)
                pltpu.VMEM((tb, acc_w), jnp.float32),  # running sum exp (l)
                pltpu.VMEM((tb, acc_w), jnp.float32),  # sum z*x
                pltpu.VMEM((tb, acc_w), jnp.float32),  # sum x
                pltpu.VMEM((tb, T), mxu_dtype),        # cached doc_vec
            ],
        ),
        compiler_params=pltpu.CompilerParams(
            dimension_semantics=("parallel", "arbitrary"),
            vmem_limit_bytes=_VMEM_LIMIT_BYTES),
    )(doc_freq_vecs, mean, logsigm, eps, wt, b2)
    return out[:, 0]


def decoder_forward_eval(doc_freq_vecs, mean, w_dec, b_dec, *,
                         block_b=256, block_v=4096, use_bf16=True):
    """Returns the scalar recon error of the eval path."""
    (B, V, T, tb, tv, nchunks, acc_w, mxu_dtype, wt, b2) = _prep_common(
        doc_freq_vecs, mean, w_dec, b_dec, block_b, block_v, use_bf16)

    out = pl.pallas_call(
        functools.partial(_decoder_eval_kernel, nchunks=nchunks),
        out_shape=jax.ShapeDtypeStruct((B, acc_w), jnp.float32),
        grid_spec=pltpu.PrefetchScalarGridSpec(
            num_scalar_prefetch=0,
            grid=(B // tb, 2, V // tv),
            in_specs=[
                pl.BlockSpec((tb, tv), lambda i, p, j: (i, j)),  # doc_freq_vecs
                pl.BlockSpec((tb, T), lambda i, p, j: (i, 0)),   # mean
                pl.BlockSpec((T, tv), lambda i, p, j: (0, j)),   # W^T bf16
                pl.BlockSpec((1, tv), lambda i, p, j: (0, j)),   # bias
            ],
            out_specs=pl.BlockSpec((tb, acc_w), lambda i, p, j: (i, 0)),
            scratch_shapes=[
                pltpu.VMEM((tb, acc_w), jnp.float32),  # running max
                pltpu.VMEM((tb, acc_w), jnp.float32),  # running sum exp
                pltpu.VMEM((tb, acc_w), jnp.float32),  # sum x
                pltpu.VMEM((tb, acc_w), jnp.float32),  # |.| accumulator
                pltpu.VMEM((tb, 1), jnp.float32),      # finalized lse
                pltpu.VMEM((tb, 1), jnp.float32),      # 1 / sum x
            ],
        ),
        compiler_params=pltpu.CompilerParams(
            dimension_semantics=("parallel", "arbitrary", "arbitrary"),
            vmem_limit_bytes=_VMEM_LIMIT_BYTES),
    )(doc_freq_vecs, mean, wt, b2)
    return jnp.sum(out)


# ----------------------------------------------------------------------------
# Pure-JAX references (for correctness check)
# ----------------------------------------------------------------------------
def _matmul_ref(a, w, b, use_bf16):
    if use_bf16:
        z = lax.dot_general(a.astype(jnp.bfloat16), w.astype(jnp.bfloat16),
                            dimension_numbers=(((1,), (1,)), ((), ())),
                            preferred_element_type=jnp.float32)
    else:
        z = a @ w.T
    return z + b


def _ref_train(x, mean, logsigm, eps, w, b, use_bf16):
    doc_vec = jnp.exp(logsigm) * eps + mean
    z = _matmul_ref(doc_vec, w, b, use_bf16)
    logprobs = jax.nn.log_softmax(z, axis=1)
    return -jnp.sum(logprobs * x, axis=1)


def _ref_eval(x, mean, w, b, use_bf16):
    z = _matmul_ref(mean, w, b, use_bf16)
    temp = x / jnp.sum(x, axis=-1, keepdims=True)
    return jnp.sum(jnp.abs(temp - jax.nn.softmax(z, axis=-1)))


# ----------------------------------------------------------------------------
# Main
# ----------------------------------------------------------------------------
if __name__ == "__main__":

    def run_case(B, T, V, block_b, block_v):
        key = jax.random.PRNGKey(0)
        k_x, k_mean, k_ls, k_eps, k_w, k_b = jax.random.split(key, 6)

        # Synthetic bag-of-words counts (non-negative, each doc non-empty).
        doc_freq = jnp.floor(
            5.0 * jax.random.uniform(k_x, (B, V), dtype=jnp.float32))
        doc_freq = doc_freq.at[:, 0].add(1.0)

        mean = 0.1 * jax.random.normal(k_mean, (B, T), dtype=jnp.float32)
        logsigm = 0.1 * jax.random.normal(k_ls, (B, T), dtype=jnp.float32)
        eps = jax.random.normal(k_eps, (B, T), dtype=jnp.float32)

        # Decoder params: nn.Linear(n_topics, n_input) -> weight (V,T), bias (V,)
        w_dec = (1.0 / np.sqrt(T)) * jax.random.normal(k_w, (V, T),
                                                       dtype=jnp.float32)
        b_dec = 0.01 * jax.random.normal(k_b, (V,), dtype=jnp.float32)

        # Stream the dominant (B, V) operand as bf16 (counts <= 5 here: exact).
        x_bf16 = doc_freq.astype(jnp.bfloat16)

        recon_train = decoder_forward_train(x_bf16, mean, logsigm, eps,
                                            w_dec, b_dec,
                                            block_b=block_b, block_v=block_v)
        recon_eval = decoder_forward_eval(x_bf16, mean, w_dec, b_dec,
                                          block_b=block_b, block_v=block_v)
        jax.block_until_ready((recon_train, recon_eval))

        # Tight check vs. a reference using the same bf16 MXU operands.
        ref_train_bf16 = _ref_train(doc_freq, mean, logsigm, eps, w_dec, b_dec,
                                    use_bf16=True)
        ref_eval_bf16 = _ref_eval(doc_freq, mean, w_dec, b_dec, use_bf16=True)
        np.testing.assert_allclose(np.asarray(recon_train),
                                   np.asarray(ref_train_bf16),
                                   rtol=1e-4, atol=1e-2)
        np.testing.assert_allclose(np.asarray(recon_eval),
                                   np.asarray(ref_eval_bf16),
                                   rtol=1e-4, atol=1e-3)

        # Loose sanity check vs. the full-f32 (PyTorch-equivalent) reference.
        ref_train_f32 = _ref_train(doc_freq, mean, logsigm, eps, w_dec, b_dec,
                                   use_bf16=False)
        ref_eval_f32 = _ref_eval(doc_freq, mean, w_dec, b_dec, use_bf16=False)
        np.testing.assert_allclose(np.asarray(recon_train),
                                   np.asarray(ref_train_f32),
                                   rtol=2e-2, atol=5.0)
        np.testing.assert_allclose(np.asarray(recon_eval),
                                   np.asarray(ref_eval_f32),
                                   rtol=1e-1, atol=1.0)

    # Case 1: multi-tile on batch AND vocab; lane-dense (tb,128) accumulators.
    run_case(B=32, T=16, V=256, block_b=16, block_v=128)
    # Case 2: V not a multiple of 128 (like n_input=2000) -> full-extent vocab
    # tile, classic (tb,1) reduction fallback path.
    run_case(B=32, T=16, V=200, block_b=16, block_v=4096)

    print("KERNEL_OK")
</pallas_src>

<mosaic_0001>
module attributes {stable_mosaic.version = 11 : i64} {
  func.func @_decoder_train_kernel(%arg0: i32, %arg1: i32, %arg2: memref<16x128xbf16, #tpu.memory_space<vmem>>, %arg3: memref<16x16xf32, #tpu.memory_space<vmem>>, %arg4: memref<16x16xf32, #tpu.memory_space<vmem>>, %arg5: memref<16x16xf32, #tpu.memory_space<vmem>>, %arg6: memref<16x128xbf16, #tpu.memory_space<vmem>>, %arg7: memref<1x128xf32, #tpu.memory_space<vmem>>, %arg8: memref<16x1xf32, #tpu.memory_space<vmem>>, %arg9: memref<16x128xf32, #tpu.memory_space<vmem>>, %arg10: memref<16x128xf32, #tpu.memory_space<vmem>>, %arg11: memref<16x128xf32, #tpu.memory_space<vmem>>, %arg12: memref<16x128xf32, #tpu.memory_space<vmem>>, %arg13: memref<16x16xbf16, #tpu.memory_space<vmem>>) attributes {dimension_semantics = [#tpu.dimension_semantics<parallel>, #tpu.dimension_semantics<arbitrary>], iteration_bounds = array<i64: 2, 2>, scalar_prefetch = 0 : i64, scratch_operands = 5 : i64, tpu.core_type = #tpu.core_type<tc>, window_params = [{transform_indices = @transform_0, window_bounds = array<i64: 16, 128>}, {transform_indices = @transform_1, window_bounds = array<i64: 16, 16>}, {transform_indices = @transform_2, window_bounds = array<i64: 16, 16>}, {transform_indices = @transform_3, window_bounds = array<i64: 16, 16>}, {transform_indices = @transform_4, window_bounds = array<i64: 16, 128>}, {transform_indices = @transform_5, window_bounds = array<i64: 1, 128>}, {transform_indices = @transform_6, window_bounds = array<i64: 16, 1>}]} {
    %c0_i32 = arith.constant 0 : i32
    %0 = arith.cmpi eq, %arg1, %c0_i32 : i32
    %1 = arith.extui %0 : i1 to i32
    %c0_i32_0 = arith.constant 0 : i32
    %2 = arith.cmpi ne, %1, %c0_i32_0 : i32
    scf.if %2 {
      %cst_27 = arith.constant 0xFF800000 : f32
      %33 = vector.broadcast %cst_27 : f32 to vector<16x128xf32>
      %c0_28 = arith.constant 0 : index
      %c0_29 = arith.constant 0 : index
      %34 = vector.load %arg9[%c0_28, %c0_29] : memref<16x128xf32, #tpu.memory_space<vmem>>, vector<16x128xf32>
      tpu.vector_store %arg9[%c0_28, %c0_29], %33 {strides = array<i32>} : memref<16x128xf32, #tpu.memory_space<vmem>>, vector<16x128xf32>,
      %cst_30 = arith.constant 0.000000e+00 : f32
      %35 = vector.broadcast %cst_30 : f32 to vector<16x128xf32>
      %c0_31 = arith.constant 0 : index
      %c0_32 = arith.constant 0 : index
      %36 = vector.load %arg10[%c0_31, %c0_32] : memref<16x128xf32, #tpu.memory_space<vmem>>, vector<16x128xf32>
      tpu.vector_store %arg10[%c0_31, %c0_32], %35 {strides = array<i32>} : memref<16x128xf32, #tpu.memory_space<vmem>>, vector<16x128xf32>,
      %cst_33 = arith.constant 0.000000e+00 : f32
      %37 = vector.broadcast %cst_33 : f32 to vector<16x128xf32>
      %c0_34 = arith.constant 0 : index
      %c0_35 = arith.constant 0 : index
      %38 = vector.load %arg11[%c0_34, %c0_35] : memref<16x128xf32, #tpu.memory_space<vmem>>, vector<16x128xf32>
      tpu.vector_store %arg11[%c0_34, %c0_35], %37 {strides = array<i32>} : memref<16x128xf32, #tpu.memory_space<vmem>>, vector<16x128xf32>,
      %cst_36 = arith.constant 0.000000e+00 : f32
      %39 = vector.broadcast %cst_36 : f32 to vector<16x128xf32>
      %c0_37 = arith.constant 0 : index
      %c0_38 = arith.constant 0 : index
      %40 = vector.load %arg12[%c0_37, %c0_38] : memref<16x128xf32, #tpu.memory_space<vmem>>, vector<16x128xf32>
      tpu.vector_store %arg12[%c0_37, %c0_38], %39 {strides = array<i32>} : memref<16x128xf32, #tpu.memory_space<vmem>>, vector<16x128xf32>,
      %c0_39 = arith.constant 0 : index
      %c0_40 = arith.constant 0 : index
      %41 = vector.load %arg4[%c0_39, %c0_40] : memref<16x16xf32, #tpu.memory_space<vmem>>, vector<16x16xf32>
      %42 = math.exp %41 : vector<16x16xf32>
      %c0_41 = arith.constant 0 : index
      %c0_42 = arith.constant 0 : index
      %43 = vector.load %arg5[%c0_41, %c0_42] : memref<16x16xf32, #tpu.memory_space<vmem>>, vector<16x16xf32>
      %44 = arith.mulf %42, %43 : vector<16x16xf32>
      %c0_43 = arith.constant 0 : index
      %c0_44 = arith.constant 0 : index
      %45 = vector.load %arg3[%c0_43, %c0_44] : memref<16x16xf32, #tpu.memory_space<vmem>>, vector<16x16xf32>
      %46 = arith.addf %44, %45 : vector<16x16xf32>
      %47 = arith.truncf %46 : vector<16x16xf32> to vector<16x16xbf16>
      %c0_45 = arith.constant 0 : index
      %c0_46 = arith.constant 0 : index
      %48 = vector.load %arg13[%c0_45, %c0_46] : memref<16x16xbf16, #tpu.memory_space<vmem>>, vector<16x16xbf16>
      tpu.vector_store %arg13[%c0_45, %c0_46], %47 {strides = array<i32>} : memref<16x16xbf16, #tpu.memory_space<vmem>>, vector<16x16xbf16>,
    } else {
    }
    %c0 = arith.constant 0 : index
    %c0_1 = arith.constant 0 : index
    %3 = vector.load %arg13[%c0, %c0_1] : memref<16x16xbf16, #tpu.memory_space<vmem>>, vector<16x16xbf16>
    %c0_2 = arith.constant 0 : index
    %c0_3 = arith.constant 0 : index
    %4 = vector.load %arg6[%c0_2, %c0_3] : memref<16x128xbf16, #tpu.memory_space<vmem>>, vector<16x128xbf16>
    %cst = arith.constant dense<0.000000e+00> : vector<16x128xf32>
    %5 = tpu.matmul %3, %4, %cst {dimension_numbers = #tpu.dot_dimension_numbers<[1], [0], [0], [1], [0, 0, 1, 1], [], []>} : vector<16x16xbf16>, vector<16x128xbf16>, vector<16x128xf32> -> vector<16x128xf32>
    %c0_4 = arith.constant 0 : index
    %c0_5 = arith.constant 0 : index
    %6 = vector.load %arg7[%c0_4, %c0_5] : memref<1x128xf32, #tpu.memory_space<vmem>>, vector<1x128xf32>
    %7 = vector.broadcast %6 : vector<1x128xf32> to vector<16x128xf32>
    %8 = arith.addf %5, %7 : vector<16x128xf32>
    %c0_6 = arith.constant 0 : index
    %c0_7 = arith.constant 0 : index
    %9 = vector.load %arg2[%c0_6, %c0_7] : memref<16x128xbf16, #tpu.memory_space<vmem>>, vector<16x128xbf16>
    %10 = arith.extf %9 : vector<16x128xbf16> to vector<16x128xf32>
    %c0_8 = arith.constant 0 : index
    %c0_9 = arith.constant 0 : index
    %11 = vector.load %arg9[%c0_8, %c0_9] : memref<16x128xf32, #tpu.memory_space<vmem>>, vector<16x128xf32>
    %12 = arith.maximumf %11, %8 : vector<16x128xf32>
    %c0_10 = arith.constant 0 : index
    %c0_11 = arith.constant 0 : index
    %13 = vector.load %arg9[%c0_10, %c0_11] : memref<16x128xf32, #tpu.memory_space<vmem>>, vector<16x128xf32>
    %14 = arith.subf %13, %12 : vector<16x128xf32>
    %15 = math.exp %14 : vector<16x128xf32>
    %c0_12 = arith.constant 0 : index
    %c0_13 = arith.constant 0 : index
    %16 = vector.load %arg10[%c0_12, %c0_13] : memref<16x128xf32, #tpu.memory_space<vmem>>, vector<16x128xf32>
    %17 = arith.mulf %15, %16 : vector<16x128xf32>
    %18 = arith.subf %8, %12 : vector<16x128xf32>
    %19 = math.exp %18 : vector<16x128xf32>
    %20 = arith.addf %17, %19 : vector<16x128xf32>
    %c0_14 = arith.constant 0 : index
    %c0_15 = arith.constant 0 : index
    %21 = vector.load %arg10[%c0_14, %c0_15] : memref<16x128xf32, #tpu.memory_space<vmem>>, vector<16x128xf32>
    tpu.vector_store %arg10[%c0_14, %c0_15], %20 {strides = array<i32>} : memref<16x128xf32, #tpu.memory_space<vmem>>, vector<16x128xf32>,
    %c0_16 = arith.constant 0 : index
    %c0_17 = arith.constant 0 : index
    %22 = vector.load %arg9[%c0_16, %c0_17] : memref<16x128xf32, #tpu.memory_space<vmem>>, vector<16x128xf32>
    tpu.vector_store %arg9[%c0_16, %c0_17], %12 {strides = array<i32>} : memref<16x128xf32, #tpu.memory_space<vmem>>, vector<16x128xf32>,
    %c0_18 = arith.constant 0 : index
    %c0_19 = arith.constant 0 : index
    %23 = vector.load %arg11[%c0_18, %c0_19] : memref<16x128xf32, #tpu.memory_space<vmem>>, vector<16x128xf32>
    %24 = arith.mulf %8, %10 : vector<16x128xf32>
    %25 = arith.addf %23, %24 : vector<16x128xf32>
    %c0_20 = arith.constant 0 : index
    %c0_21 = arith.constant 0 : index
    %26 = vector.load %arg11[%c0_20, %c0_21] : memref<16x128xf32, #tpu.memory_space<vmem>>, vector<16x128xf32>
    tpu.vector_store %arg11[%c0_20, %c0_21], %25 {strides = array<i32>} : memref<16x128xf32, #tpu.memory_space<vmem>>, vector<16x128xf32>,
    %c0_22 = arith.constant 0 : index
    %c0_23 = arith.constant 0 : index
    %27 = vector.load %arg12[%c0_22, %c0_23] : memref<16x128xf32, #tpu.memory_space<vmem>>, vector<16x128xf32>
    %28 = arith.addf %27, %10 : vector<16x128xf32>
    %c0_24 = arith.constant 0 : index
    %c0_25 = arith.constant 0 : index
    %29 = vector.load %arg12[%c0_24, %c0_25] : memref<16x128xf32, #tpu.memory_space<vmem>>, vector<16x128xf32>
    tpu.vector_store %arg12[%c0_24, %c0_25], %28 {strides = array<i32>} : memref<16x128xf32, #tpu.memory_space<vmem>>, vector<16x128xf32>,
    %c1_i32 = arith.constant 1 : i32
    %30 = arith.cmpi eq, %arg1, %c1_i32 : i32
    %31 = arith.extui %30 : i1 to i32
    %c0_i32_26 = arith.constant 0 : i32
    %32 = arith.cmpi ne, %31, %c0_i32_26 : i32
    scf.if %32 {
      %c0_27 = arith.constant 0 : index
      %c0_28 = arith.constant 0 : index
      %33 = vector.load %arg9[%c0_27, %c0_28] : memref<16x128xf32, #tpu.memory_space<vmem>>, vector<16x128xf32>
      %cst_29 = arith.constant dense<0xFF800000> : vector<16xf32>
      %34 = vector.multi_reduction <maximumf>, %33, %cst_29 [1] : vector<16x128xf32> to vector<16xf32>
      %35 = vector.shape_cast %34 : vector<16xf32> to vector<16x1xf32>
      %c0_30 = arith.constant 0 : index
      %c0_31 = arith.constant 0 : index
      %36 = vector.load %arg10[%c0_30, %c0_31] : memref<16x128xf32, #tpu.memory_space<vmem>>, vector<16x128xf32>
      %37 = vector.broadcast %35 : vector<16x1xf32> to vector<16x128xf32>
      %38 = arith.subf %33, %37 : vector<16x128xf32>
      %39 = math.exp %38 : vector<16x128xf32>
      %40 = arith.mulf %36, %39 : vector<16x128xf32>
      %cst_32 = arith.constant dense<0.000000e+00> : vector<16xf32>
      %41 = vector.multi_reduction <add>, %40, %cst_32 [1] : vector<16x128xf32> to vector<16xf32>
      %42 = vector.shape_cast %41 : vector<16xf32> to vector<16x1xf32>
      %43 = math.log %42 : vector<16x1xf32>
      %44 = arith.addf %35, %43 : vector<16x1xf32>
      %c0_33 = arith.constant 0 : index
      %c0_34 = arith.constant 0 : index
      %45 = vector.load %arg12[%c0_33, %c0_34] : memref<16x128xf32, #tpu.memory_space<vmem>>, vector<16x128xf32>
      %cst_35 = arith.constant dense<0.000000e+00> : vector<16xf32>
      %46 = vector.multi_reduction <add>, %45, %cst_35 [1] : vector<16x128xf32> to vector<16xf32>
      %47 = vector.shape_cast %46 : vector<16xf32> to vector<16x1xf32>
      %c0_36 = arith.constant 0 : index
      %c0_37 = arith.constant 0 : index
      %48 = vector.load %arg11[%c0_36, %c0_37] : memref<16x128xf32, #tpu.memory_space<vmem>>, vector<16x128xf32>
      %cst_38 = arith.constant dense<0.000000e+00> : vector<16xf32>
      %49 = vector.multi_reduction <add>, %48, %cst_38 [1] : vector<16x128xf32> to vector<16xf32>
      %50 = vector.shape_cast %49 : vector<16xf32> to vector<16x1xf32>
      %51 = arith.mulf %44, %47 : vector<16x1xf32>
      %52 = arith.subf %51, %50 : vector<16x1xf32>
      %c0_39 = arith.constant 0 : index
      %c0_40 = arith.constant 0 : index
      %53 = vector.load %arg8[%c0_39, %c0_40] : memref<16x1xf32, #tpu.memory_space<vmem>>, vector<16x1xf32>
      tpu.vector_store %arg8[%c0_39, %c0_40], %52 {strides = array<i32>} : memref<16x1xf32, #tpu.memory_space<vmem>>, vector<16x1xf32>,
    } else {
    }
    return
  }
  func.func @transform_0(%arg0: i32, %arg1: i32) -> (i32, i32) {
    %c0_i32 = arith.constant 0 : i32
    return %arg0, %arg1 : i32, i32
  }
  func.func @transform_1(%arg0: i32, %arg1: i32) -> (i32, i32) {
    %c0_i32 = arith.constant 0 : i32
    %c0_i32_0 = arith.constant 0 : i32
    return %arg0, %c0_i32 : i32, i32
  }
  func.func @transform_2(%arg0: i32, %arg1: i32) -> (i32, i32) {
    %c0_i32 = arith.constant 0 : i32
    %c0_i32_0 = arith.constant 0 : i32
    return %arg0, %c0_i32 : i32, i32
  }
  func.func @transform_3(%arg0: i32, %arg1: i32) -> (i32, i32) {
    %c0_i32 = arith.constant 0 : i32
    %c0_i32_0 = arith.constant 0 : i32
    return %arg0, %c0_i32 : i32, i32
  }
  func.func @transform_4(%arg0: i32, %arg1: i32) -> (i32, i32) {
    %c0_i32 = arith.constant 0 : i32
    %c0_i32_0 = arith.constant 0 : i32
    return %c0_i32, %arg1 : i32, i32
  }
  func.func @transform_5(%arg0: i32, %arg1: i32) -> (i32, i32) {
    %c0_i32 = arith.constant 0 : i32
    %c0_i32_0 = arith.constant 0 : i32
    return %c0_i32, %arg1 : i32, i32
  }
  func.func @transform_6(%arg0: i32, %arg1: i32) -> (i32, i32) {
    %c0_i32 = arith.constant 0 : i32
    %c0_i32_0 = arith.constant 0 : i32
    return %arg0, %c0_i32 : i32, i32
  }
}

</mosaic_0001>

<llo_original>
// kernel: tpu_custom_call.1
$region0: #{tpu_custom_call.1}
  #allocation0 [shape = 'u32[]', space=smem, size = 0x4, offset = 0x4, fixed_abs, tag = 'smem constant byte address 0x4 - core index']
  #allocation1 [shape = 'u32[144,128]{1,0:T(1,128)}', space=vmem, size = 0x12000, scoped, tag = 'internal scratch']
  #allocation2 [shape = 'f32[16,128]{1,0:T(8,128)}', space=vmem, size = 0x2000, scoped, tag = 'scratch operand']
  #allocation3 [shape = 'f32[16,128]{1,0:T(8,128)}', space=vmem, size = 0x2000, scoped, tag = 'scratch operand']
  #allocation4 [shape = 'f32[16,128]{1,0:T(8,128)}', space=vmem, size = 0x2000, scoped, tag = 'scratch operand']
  #allocation5 [shape = 'f32[16,128]{1,0:T(8,128)}', space=vmem, size = 0x2000, scoped, tag = 'scratch operand']
  #allocation6 [shape = 'bf16[16,16]{1,0:T(16,128)(2,1)}', space=vmem, size = 0x1000, scoped, tag = 'scratch operand']
  %s0 = inlined_call_operand.vmem [shape: bf16[32,256], index: 0, kind: input, shape index: {}]
  %s1 = inlined_call_operand.vmem [shape: f32[32,16], index: 1, kind: input, shape index: {}]
  %s2 = inlined_call_operand.vmem [shape: f32[32,16], index: 2, kind: input, shape index: {}]
  %s3 = inlined_call_operand.vmem [shape: f32[32,16], index: 3, kind: input, shape index: {}]
  %s4 = inlined_call_operand.vmem [shape: bf16[16,256], index: 4, kind: input, shape index: {}]
  %s5 = inlined_call_operand.vmem [shape: f32[1,256], index: 5, kind: input, shape index: {}]
  %s6 = inlined_call_operand.vmem [shape: f32[32,1], index: 6, kind: output, shape index: {}]
  %s7 = sld [smem:[#allocation0]]
  $region147: #{tpu_custom_call.1} parent=0
    _
  %s9 = ssub.s32 1, %s7
  %s10 = scalar_select 0, %s9, %s7
  $region1: #{tpu_custom_call.1} parent=0
    #allocation7 [shape = 'u8[8192]{0}', space=vmem, size = 0x2000, scoped, tag = 'input window, operand 0']
    #allocation8 [shape = 'u8[8192]{0}', space=vmem, size = 0x2000, scoped, tag = 'input window, operand 4']
    loop: start=0, step=1, limit=6
    $region2: #{tpu_custom_call.1} parent=1 // loop_pre_header
      _
    $region3: #{tpu_custom_call.1} parent=1 // loop_header
      %s12 = sphi 0, %s16
      %p13 = scmp.ge.s32.totalorder %s12, 6
      %s19 = sphi 0, %s31
      %s20 = sphi 0, %s27
      %s21 = sphi 0, %s19
      %s22 = sphi 0, %s20
      %s23 = sphi 0, %s21
      %s24 = sphi 0, %s22
      %s36 = sphi 0, %s38
      %s39 = sphi 0, %s36
      %s40 = sphi 0, %s39
      %s56 = sphi 0, %s40
      %s62 = sphi 0, %s64
      %s65 = sphi 0, %s62
      %s66 = sphi 0, %s65
      %s82 = sphi 0, %s66
      %s88 = sphi 0, %s90
      %s91 = sphi 0, %s88
      %s92 = sphi 0, %s91
      %s108 = sphi 0, %s92
      %s114 = sphi 0, %s116
      %s117 = sphi 0, %s114
      %s118 = sphi 0, %s117
      %s134 = sphi 0, %s118
      %s140 = sphi 0, %s142
      %s143 = sphi 0, %s140
      %s144 = sphi 0, %s143
      %s160 = sphi 0, %s144
      %s166 = sphi 0, %s168
      %s169 = sphi 0, %s166
      %s170 = sphi 0, %s169
      %s186 = sphi 0, %s170
      %s192 = sphi 0, %s194
      %s195 = sphi 0, %s192
      %s196 = sphi 0, %s195
      %s212 = sphi 0, %s196
    $region4: #{tpu_custom_call.1} parent=1 // loop_header_branch
      %15 = sbr.rel (%p13) target = $region8
    $region5: #{tpu_custom_call.1} parent=1 // loop_body
      %s17 = ssub.s32 %s12, 1
      %s18 = ssub.s32 %s12, 2
      %s25 = sadd.s32 1, %s20
      %p26 = scmp.ge.s32.totalorder %s25, 2
      %s27 = scalar_select %p26, 0, %s25
      %s28 = sadd.s32 1, %s19
      %s29 = scalar_select %p26, %s28, %s19
      %p30 = scmp.ge.s32.totalorder %s29, 2
      %s31 = scalar_select %p30, 0, %s29
      %s32 = ssub.s32 %s19, %s31
      %s33 = ssub.s32 %s20, %s27
      %s34 = sor.u32 %s32, %s33
      %p35 = scmp.eq.s32.totalorder %s34, 0
      %s37 = sadd.s32 %s36, 1
      %s38 = scalar_select %p35, %s36, %s37
      %p41 = pneg %p35
      %p42 = scmp.eq.s32.totalorder %s12, 3
      %p43 = por %p41, %p42
      %p44 = scmp.ne.s32.totalorder %s36, %s39
      %p45 = scmp.eq.s32.totalorder %s12, 0
      %p46 = por %p44, %p45
      %p47 = scmp.ne.s32.totalorder %s36, %s39
      %p48 = scmp.eq.s32.totalorder %s17, 3
      %p49 = por %p47, %p48
      %p50 = scmp.ne.s32.totalorder %s39, %s40
      %p51 = scmp.eq.s32.totalorder %s17, 0
      %p52 = por %p50, %p51
      %p53 = scmp.ne.s32.totalorder %s39, %s40
      %p54 = scmp.eq.s32.totalorder %s18, 3
      %p55 = por %p53, %p54
      %p57 = scmp.ne.s32.totalorder %s40, %s56
      %p58 = scmp.eq.s32.totalorder %s18, 0
      %p59 = por %p57, %p58
      %s60 = ssub.s32 %s19, %s31
      %p61 = scmp.eq.s32.totalorder %s60, 0
      %s63 = sadd.s32 %s62, 1
      %s64 = scalar_select %p61, %s62, %s63
      %p67 = pneg %p61
      %p68 = scmp.eq.s32.totalorder %s12, 3
      %p69 = por %p67, %p68
      %p70 = scmp.ne.s32.totalorder %s62, %s65
      %p71 = scmp.eq.s32.totalorder %s12, 0
      %p72 = por %p70, %p71
      %p73 = scmp.ne.s32.totalorder %s62, %s65
      %p74 = scmp.eq.s32.totalorder %s17, 3
      %p75 = por %p73, %p74
      %p76 = scmp.ne.s32.totalorder %s65, %s66
      %p77 = scmp.eq.s32.totalorder %s17, 0
      %p78 = por %p76, %p77
      %p79 = scmp.ne.s32.totalorder %s65, %s66
      %p80 = scmp.eq.s32.totalorder %s18, 3
      %p81 = por %p79, %p80
      %p83 = scmp.ne.s32.totalorder %s66, %s82
      %p84 = scmp.eq.s32.totalorder %s18, 0
      %p85 = por %p83, %p84
      %s86 = ssub.s32 %s19, %s31
      %p87 = scmp.eq.s32.totalorder %s86, 0
      %s89 = sadd.s32 %s88, 1
      %s90 = scalar_select %p87, %s88, %s89
      %p93 = pneg %p87
      %p94 = scmp.eq.s32.totalorder %s12, 3
      %p95 = por %p93, %p94
      %p96 = scmp.ne.s32.totalorder %s88, %s91
      %p97 = scmp.eq.s32.totalorder %s12, 0
      %p98 = por %p96, %p97
      %p99 = scmp.ne.s32.totalorder %s88, %s91
      %p100 = scmp.eq.s32.totalorder %s17, 3
      %p101 = por %p99, %p100
      %p102 = scmp.ne.s32.totalorder %s91, %s92
      %p103 = scmp.eq.s32.totalorder %s17, 0
      %p104 = por %p102, %p103
      %p105 = scmp.ne.s32.totalorder %s91, %s92
      %p106 = scmp.eq.s32.totalorder %s18, 3
      %p107 = por %p105, %p106
      %p109 = scmp.ne.s32.totalorder %s92, %s108
      %p110 = scmp.eq.s32.totalorder %s18, 0
      %p111 = por %p109, %p110
      %s112 = ssub.s32 %s19, %s31
      %p113 = scmp.eq.s32.totalorder %s112, 0
      %s115 = sadd.s32 %s114, 1
      %s116 = scalar_select %p113, %s114, %s115
      %p119 = pneg %p113
      %p120 = scmp.eq.s32.totalorder %s12, 3
      %p121 = por %p119, %p120
      %p122 = scmp.ne.s32.totalorder %s114, %s117
      %p123 = scmp.eq.s32.totalorder %s12, 0
      %p124 = por %p122, %p123
      %p125 = scmp.ne.s32.totalorder %s114, %s117
      %p126 = scmp.eq.s32.totalorder %s17, 3
      %p127 = por %p125, %p126
      %p128 = scmp.ne.s32.totalorder %s117, %s118
      %p129 = scmp.eq.s32.totalorder %s17, 0
      %p130 = por %p128, %p129
      %p131 = scmp.ne.s32.totalorder %s117, %s118
      %p132 = scmp.eq.s32.totalorder %s18, 3
      %p133 = por %p131, %p132
      %p135 = scmp.ne.s32.totalorder %s118, %s134
      %p136 = scmp.eq.s32.totalorder %s18, 0
      %p137 = por %p135, %p136
      %s138 = ssub.s32 %s20, %s27
      %p139 = scmp.eq.s32.totalorder %s138, 0
      %s141 = sadd.s32 %s140, 1
      %s142 = scalar_select %p139, %s140, %s141
      %p145 = pneg %p139
      %p146 = scmp.eq.s32.totalorder %s12, 3
      %p147 = por %p145, %p146
      %p148 = scmp.ne.s32.totalorder %s140, %s143
      %p149 = scmp.eq.s32.totalorder %s12, 0
      %p150 = por %p148, %p149
      %p151 = scmp.ne.s32.totalorder %s140, %s143
      %p152 = scmp.eq.s32.totalorder %s17, 3
      %p153 = por %p151, %p152
      %p154 = scmp.ne.s32.totalorder %s143, %s144
      %p155 = scmp.eq.s32.totalorder %s17, 0
      %p156 = por %p154, %p155
      %p157 = scmp.ne.s32.totalorder %s143, %s144
      %p158 = scmp.eq.s32.totalorder %s18, 3
      %p159 = por %p157, %p158
      %p161 = scmp.ne.s32.totalorder %s144, %s160
      %p162 = scmp.eq.s32.totalorder %s18, 0
      %p163 = por %p161, %p162
      %s164 = ssub.s32 %s20, %s27
      %p165 = scmp.eq.s32.totalorder %s164, 0
      %s167 = sadd.s32 %s166, 1
      %s168 = scalar_select %p165, %s166, %s167
      %p171 = pneg %p165
      %p172 = scmp.eq.s32.totalorder %s12, 3
      %p173 = por %p171, %p172
      %p174 = scmp.ne.s32.totalorder %s166, %s169
      %p175 = scmp.eq.s32.totalorder %s12, 0
      %p176 = por %p174, %p175
      %p177 = scmp.ne.s32.totalorder %s166, %s169
      %p178 = scmp.eq.s32.totalorder %s17, 3
      %p179 = por %p177, %p178
      %p180 = scmp.ne.s32.totalorder %s169, %s170
      %p181 = scmp.eq.s32.totalorder %s17, 0
      %p182 = por %p180, %p181
      %p183 = scmp.ne.s32.totalorder %s169, %s170
      %p184 = scmp.eq.s32.totalorder %s18, 3
      %p185 = por %p183, %p184
      %p187 = scmp.ne.s32.totalorder %s170, %s186
      %p188 = scmp.eq.s32.totalorder %s18, 0
      %p189 = por %p187, %p188
      %s190 = ssub.s32 %s19, %s31
      %p191 = scmp.eq.s32.totalorder %s190, 0
      %s193 = sadd.s32 %s192, 1
      %s194 = scalar_select %p191, %s192, %s193
      %p197 = pneg %p191
      %p198 = scmp.eq.s32.totalorder %s12, 3
      %p199 = por %p197, %p198
      %p200 = scmp.ne.s32.totalorder %s192, %s195
      %p201 = scmp.eq.s32.totalorder %s12, 0
      %p202 = por %p200, %p201
      %p203 = scmp.ne.s32.totalorder %s192, %s195
      %p204 = scmp.eq.s32.totalorder %s17, 3
      %p205 = por %p203, %p204
      %p206 = scmp.ne.s32.totalorder %s195, %s196
      %p207 = scmp.eq.s32.totalorder %s17, 0
      %p208 = por %p206, %p207
      %p209 = scmp.ne.s32.totalorder %s195, %s196
      %p210 = scmp.eq.s32.totalorder %s18, 3
      %p211 = por %p209, %p210
      %p213 = scmp.ne.s32.totalorder %s196, %s212
      %p214 = scmp.eq.s32.totalorder %s18, 0
      %p215 = por %p213, %p214
      %p216 = scmp.le.s32.totalorder 1, %s12
      %p217 = scmp.lt.s32.totalorder %s12, 5
      %p218 = pnand %p216, %p217
      %p219 = pneg %p218
      // Predicated region
      $region9: #{tpu_custom_call.1} parent=5 // pred_check
        _
      $region10: #{tpu_custom_call.1} parent=5 // pred_check_branch
        %221 = sbr.rel (%p218) target = $region12
      $region11: #{tpu_custom_call.1} parent=5 // pred_region
        %s222 = ssub.s32 %s12, 1
      $region12: #{tpu_custom_call.1} parent=5 // pred_fallthru
        _
      %p223 = scmp.lt.s32.totalorder %s12, 4
      // Predicated region
      $region13: #{tpu_custom_call.1} parent=5 // pred_check
        %p224 = pneg %p223
      $region14: #{tpu_custom_call.1} parent=5 // pred_check_branch
        %226 = sbr.rel (%p224) target = $region16
      $region15: #{tpu_custom_call.1} parent=5 // pred_region
        // Predicated region
        $region17: #{tpu_custom_call.1} parent=15 // pred_check
          %p227 = pneg %p46
        $region18: #{tpu_custom_call.1} parent=15 // pred_check_branch
          %229 = sbr.rel (%p227) target = $region20
        $region19: #{tpu_custom_call.1} parent=15 // pred_region
          %s230 = sand.u32 %s36, 1
          %s231 = sand.u32 %s36, 1
          %s232 = smul.addr %s231, 8
          %s233 = scalar_lea.vmem [#allocation7], %s232
          %s234 = smul.u32 2, %s19
          %s235 = smul.addr %s234, 2
          %s236 = sadd.s32 %s20, %s235
          %s237 = smul.addr %s236, 4
          %s238 = scalar_lea.vmem %s0, %s237
          // Predicated region
          $region21: #{tpu_custom_call.1} parent=19 // pred_check
            _
          $region22: #{tpu_custom_call.1} parent=19 // pred_check_branch
            %240 = sbr.rel (0) target = $region24
          $region23: #{tpu_custom_call.1} parent=19 // pred_region
            // Predicated region
            $region25: #{tpu_custom_call.1} parent=23 // pred_check
              _
            $region26: #{tpu_custom_call.1} parent=23 // pred_check_branch
              %242 = sbr.rel target = $region28
            $region27: #{tpu_custom_call.1} parent=23 // pred_region
              // Predicated region
              $region40: #{tpu_custom_call.1} parent=27 // pred_check
                _
              $region41: #{tpu_custom_call.1} parent=27 // pred_check_branch
                %259 = sbr.rel (0) target = $region43
              $region42: #{tpu_custom_call.1} parent=27 // pred_region
                loop: start=0, step=1, limit=1
                $region44: #{tpu_custom_call.1} parent=42 // loop_pre_header
                  _
                $region45: #{tpu_custom_call.1} parent=42 // loop_header
                  %s261 = sphi 0, %s265
                  %p262 = scmp.ge.s32.totalorder %s261, 1
                  %s266 = sphi %s238, %s238
                  %s267 = sphi %s233, %s233
                $region46: #{tpu_custom_call.1} parent=42 // loop_header_branch
                  %264 = sbr.rel (%p262) target = $region50
                $region47: #{tpu_custom_call.1} parent=42 // loop_body
                  _
                $region48: #{tpu_custom_call.1} parent=42 // loop_footer
                  %s265 = sadd.s32 1, %s261
                $region49: #{tpu_custom_call.1} parent=42 // loop_footer_branch
                  %260 = sbr.rel target = $region45
                $region50: #{tpu_custom_call.1} parent=42 // loop_exit
                  _
                loop: start=0, step=1, limit=1
                $region51: #{tpu_custom_call.1} parent=42 // loop_pre_header
                  _
                $region52: #{tpu_custom_call.1} parent=42 // loop_header
                  %s270 = sphi 0, %s274
                  %p271 = scmp.ge.s32.totalorder %s270, 1
                  %s275 = sphi %s238, %s238
                  %s276 = sphi %s233, %s233
                $region53: #{tpu_custom_call.1} parent=42 // loop_header_branch
                  %273 = sbr.rel (%p271) target = $region57
                $region54: #{tpu_custom_call.1} parent=42 // loop_body
                  %v277 = vld [vmem:[%s275] sm:$0xf]
                  %278 = vst [vmem:[%s276] sm:$0xf] %v277
                  %v279 = vld [vmem:[%s275 + $0x8] sm:$0xf]
                  %280 = vst [vmem:[%s276 + $0x4] sm:$0xf] %v279
                $region55: #{tpu_custom_call.1} parent=42 // loop_footer
                  %s274 = sadd.s32 1, %s270
                $region56: #{tpu_custom_call.1} parent=42 // loop_footer_branch
                  %269 = sbr.rel target = $region52
                $region57: #{tpu_custom_call.1} parent=42 // loop_exit
                  _
              $region43: #{tpu_custom_call.1} parent=27 // pred_fallthru
                _
            $region28: #{tpu_custom_call.1} parent=23 // pred_fallthru
              _
            // Predicated region
            $region29: #{tpu_custom_call.1} parent=23 // pred_check
              _
            $region30: #{tpu_custom_call.1} parent=23 // pred_check_branch
              %244 = sbr.rel (0) target = $region32
            $region31: #{tpu_custom_call.1} parent=23 // pred_region
              loop: start=0, step=1, limit=1
              $region33: #{tpu_custom_call.1} parent=31 // loop_pre_header
                _
              $region34: #{tpu_custom_call.1} parent=31 // loop_header
                %s247 = sphi 0, %s251
                %p248 = scmp.ge.s32.totalorder %s247, 1
                %s252 = sphi %s238, %s238
                %s253 = sphi %s233, %s233
              $region35: #{tpu_custom_call.1} parent=31 // loop_header_branch
                %250 = sbr.rel (%p248) target = $region39
              $region36: #{tpu_custom_call.1} parent=31 // loop_body
                %v254 = vld [vmem:[%s252] sm:$0xf]
                %255 = vst [vmem:[%s253] sm:$0xf] %v254
                %v256 = vld [vmem:[%s252 + $0x8] sm:$0xf]
                %257 = vst [vmem:[%s253 + $0x4] sm:$0xf] %v256
              $region37: #{tpu_custom_call.1} parent=31 // loop_footer
                %s251 = sadd.s32 1, %s247
              $region38: #{tpu_custom_call.1} parent=31 // loop_footer_branch
                %246 = sbr.rel target = $region34
              $region39: #{tpu_custom_call.1} parent=31 // loop_exit
                _
            $region32: #{tpu_custom_call.1} parent=23 // pred_fallthru
              _
          $region24: #{tpu_custom_call.1} parent=19 // pred_fallthru
            _
          %281 = vnop
        $region20: #{tpu_custom_call.1} parent=15 // pred_fallthru
          _
        // Predicated region
        $region58: #{tpu_custom_call.1} parent=15 // pred_check
          %p282 = pneg %p72
        $region59: #{tpu_custom_call.1} parent=15 // pred_check_branch
          %284 = sbr.rel (%p282) target = $region61
        $region60: #{tpu_custom_call.1} parent=15 // pred_region
          %s285 = smul.u32 2, %s19
          %p286 = scmp.lt.s32.totalorder %s285, 3
          %s287 = scalar_select %p286, %s285, 3
          %s288 = smul.addr %s287, 8
          %s289 = scalar_lea.vmem %s1, %s288
          %s290 = smul.u32 2, %s19
        $region61: #{tpu_custom_call.1} parent=15 // pred_fallthru
          _
        // Predicated region
        $region62: #{tpu_custom_call.1} parent=15 // pred_check
          %p291 = pneg %p98
        $region63: #{tpu_custom_call.1} parent=15 // pred_check_branch
          %293 = sbr.rel (%p291) target = $region65
        $region64: #{tpu_custom_call.1} parent=15 // pred_region
          %s294 = smul.u32 2, %s19
          %p295 = scmp.lt.s32.totalorder %s294, 3
          %s296 = scalar_select %p295, %s294, 3
          %s297 = smul.addr %s296, 8
          %s298 = scalar_lea.vmem %s2, %s297
          %s299 = smul.u32 2, %s19
        $region65: #{tpu_custom_call.1} parent=15 // pred_fallthru
          _
        // Predicated region
        $region66: #{tpu_custom_call.1} parent=15 // pred_check
          %p300 = pneg %p124
        $region67: #{tpu_custom_call.1} parent=15 // pred_check_branch
          %302 = sbr.rel (%p300) target = $region69
        $region68: #{tpu_custom_call.1} parent=15 // pred_region
          %s303 = smul.u32 2, %s19
          %p304 = scmp.lt.s32.totalorder %s303, 3
          %s305 = scalar_select %p304, %s303, 3
          %s306 = smul.addr %s305, 8
          %s307 = scalar_lea.vmem %s3, %s306
          %s308 = smul.u32 2, %s19
        $region69: #{tpu_custom_call.1} parent=15 // pred_fallthru
          _
        // Predicated region
        $region70: #{tpu_custom_call.1} parent=15 // pred_check
          %p309 = pneg %p150
        $region71: #{tpu_custom_call.1} parent=15 // pred_check_branch
          %311 = sbr.rel (%p309) target = $region73
        $region72: #{tpu_custom_call.1} parent=15 // pred_region
          %s312 = sand.u32 %s140, 1
          %s313 = sand.u32 %s140, 1
          %s314 = smul.addr %s313, 8
          %s315 = scalar_lea.vmem [#allocation8], %s314
          %s316 = smul.addr %s20, 4
          %s317 = scalar_lea.vmem %s4, %s316
          // Predicated region
          $region74: #{tpu_custom_call.1} parent=72 // pred_check
            _
          $region75: #{tpu_custom_call.1} parent=72 // pred_check_branch
            %319 = sbr.rel (0) target = $region77
          $region76: #{tpu_custom_call.1} parent=72 // pred_region
            // Predicated region
            $region78: #{tpu_custom_call.1} parent=76 // pred_check
              _
            $region79: #{tpu_custom_call.1} parent=76 // pred_check_branch
              %321 = sbr.rel target = $region81
            $region80: #{tpu_custom_call.1} parent=76 // pred_region
              // Predicated region
              $region93: #{tpu_custom_call.1} parent=80 // pred_check
                _
              $region94: #{tpu_custom_call.1} parent=80 // pred_check_branch
                %338 = sbr.rel (0) target = $region96
              $region95: #{tpu_custom_call.1} parent=80 // pred_region
                loop: start=0, step=1, limit=1
                $region97: #{tpu_custom_call.1} parent=95 // loop_pre_header
                  _
                $region98: #{tpu_custom_call.1} parent=95 // loop_header
                  %s340 = sphi 0, %s344
                  %p341 = scmp.ge.s32.totalorder %s340, 1
                  %s345 = sphi %s317, %s317
                  %s346 = sphi %s315, %s315
                $region99: #{tpu_custom_call.1} parent=95 // loop_header_branch
                  %343 = sbr.rel (%p341) target = $region103
                $region100: #{tpu_custom_call.1} parent=95 // loop_body
                  _
                $region101: #{tpu_custom_call.1} parent=95 // loop_footer
                  %s344 = sadd.s32 1, %s340
                $region102: #{tpu_custom_call.1} parent=95 // loop_footer_branch
                  %339 = sbr.rel target = $region98
                $region103: #{tpu_custom_call.1} parent=95 // loop_exit
                  _
                loop: start=0, step=1, limit=1
                $region104: #{tpu_custom_call.1} parent=95 // loop_pre_header
                  _
                $region105: #{tpu_custom_call.1} parent=95 // loop_header
                  %s349 = sphi 0, %s353
                  %p350 = scmp.ge.s32.totalorder %s349, 1
                  %s354 = sphi %s317, %s317
                  %s355 = sphi %s315, %s315
                $region106: #{tpu_custom_call.1} parent=95 // loop_header_branch
                  %352 = sbr.rel (%p350) target = $region110
                $region107: #{tpu_custom_call.1} parent=95 // loop_body
                  %v356 = vld [vmem:[%s354] sm:$0xf]
                  %357 = vst [vmem:[%s355] sm:$0xf] %v356
                  %v358 = vld [vmem:[%s354 + $0x8] sm:$0xf]
                  %359 = vst [vmem:[%s355 + $0x4] sm:$0xf] %v358
                $region108: #{tpu_custom_call.1} parent=95 // loop_footer
                  %s353 = sadd.s32 1, %s349
                $region109: #{tpu_custom_call.1} parent=95 // loop_footer_branch
                  %348 = sbr.rel target = $region105
                $region110: #{tpu_custom_call.1} parent=95 // loop_exit
                  _
              $region96: #{tpu_custom_call.1} parent=80 // pred_fallthru
                _
            $region81: #{tpu_custom_call.1} parent=76 // pred_fallthru
              _
            // Predicated region
            $region82: #{tpu_custom_call.1} parent=76 // pred_check
              _
            $region83: #{tpu_custom_call.1} parent=76 // pred_check_branch
              %323 = sbr.rel (0) target = $region85
            $region84: #{tpu_custom_call.1} parent=76 // pred_region
              loop: start=0, step=1, limit=1
              $region86: #{tpu_custom_call.1} parent=84 // loop_pre_header
                _
              $region87: #{tpu_custom_call.1} parent=84 // loop_header
                %s326 = sphi 0, %s330
                %p327 = scmp.ge.s32.totalorder %s326, 1
                %s331 = sphi %s317, %s317
                %s332 = sphi %s315, %s315
              $region88: #{tpu_custom_call.1} parent=84 // loop_header_branch
                %329 = sbr.rel (%p327) target = $region92
              $region89: #{tpu_custom_call.1} parent=84 // loop_body
                %v333 = vld [vmem:[%s331] sm:$0xf]
                %334 = vst [vmem:[%s332] sm:$0xf] %v333
                %v335 = vld [vmem:[%s331 + $0x8] sm:$0xf]
                %336 = vst [vmem:[%s332 + $0x4] sm:$0xf] %v335
              $region90: #{tpu_custom_call.1} parent=84 // loop_footer
                %s330 = sadd.s32 1, %s326
              $region91: #{tpu_custom_call.1} parent=84 // loop_footer_branch
                %325 = sbr.rel target = $region87
              $region92: #{tpu_custom_call.1} parent=84 // loop_exit
                _
            $region85: #{tpu_custom_call.1} parent=76 // pred_fallthru
              _
          $region77: #{tpu_custom_call.1} parent=72 // pred_fallthru
            _
          %360 = vnop
        $region73: #{tpu_custom_call.1} parent=15 // pred_fallthru
          _
        // Predicated region
        $region111: #{tpu_custom_call.1} parent=15 // pred_check
          %p361 = pneg %p176
        $region112: #{tpu_custom_call.1} parent=15 // pred_check_branch
          %363 = sbr.rel (%p361) target = $region114
        $region113: #{tpu_custom_call.1} parent=15 // pred_region
          %p364 = scmp.lt.s32.totalorder %s20, 1
          %s365 = scalar_select %p364, %s20, 1
          %s366 = scalar_lea.vmem %s5, %s365
        $region114: #{tpu_custom_call.1} parent=15 // pred_fallthru
          _
      $region16: #{tpu_custom_call.1} parent=5 // pred_fallthru
        _
      %p367 = scmp.le.s32.totalorder 1, %s12
      %p368 = scmp.lt.s32.totalorder %s12, 5
      %p369 = pnand %p367, %p368
      %p370 = pneg %p369
      // Predicated region
      $region115: #{tpu_custom_call.1} parent=5 // pred_check
        _
      $region116: #{tpu_custom_call.1} parent=5 // pred_check_branch
        %372 = sbr.rel (%p369) target = $region118
      $region117: #{tpu_custom_call.1} parent=5 // pred_region
        %s373 = ssub.s32 %s12, 1
        %s374 = sand.u32 %s39, 1
        %s375 = sand.u32 %s39, 1
        %s376 = smul.addr %s375, 8
        %s377 = scalar_lea.vmem [#allocation7], %s376
        // Predicated region
        $region119: #{tpu_custom_call.1} parent=117 // pred_check
          %p378 = pneg %p52
        $region120: #{tpu_custom_call.1} parent=117 // pred_check_branch
          %380 = sbr.rel (%p378) target = $region122
        $region121: #{tpu_custom_call.1} parent=117 // pred_region
          _
        $region122: #{tpu_custom_call.1} parent=117 // pred_fallthru
          _
        %s381 = sand.u32 %s143, 1
        %s382 = sand.u32 %s143, 1
        %s383 = smul.addr %s382, 8
        %s384 = scalar_lea.vmem [#allocation8], %s383
        // Predicated region
        $region123: #{tpu_custom_call.1} parent=117 // pred_check
          %p385 = pneg %p156
        $region124: #{tpu_custom_call.1} parent=117 // pred_check_branch
          %387 = sbr.rel (%p385) target = $region126
        $region125: #{tpu_custom_call.1} parent=117 // pred_region
          _
        $region126: #{tpu_custom_call.1} parent=117 // pred_fallthru
          _
        %s388 = sand.u32 %s39, 1
        %s389 = sand.u32 %s39, 1
        %s390 = smul.addr %s389, 8
        %s391 = scalar_lea.vmem [#allocation7], %s390
        %p392 = pneg %p52
        %p393 = pneg %p49
        %s394 = smul.u32 2, %s21
        %p395 = scmp.lt.s32.totalorder %s394, 3
        %s396 = scalar_select %p395, %s394, 3
        %s397 = smul.addr %s396, 8
        %s398 = scalar_lea.vmem %s1, %s397
        %p399 = pneg %p78
        %p400 = pneg %p75
        %s401 = smul.u32 2, %s21
        %p402 = scmp.lt.s32.totalorder %s401, 3
        %s403 = scalar_select %p402, %s401, 3
        %s404 = smul.addr %s403, 8
        %s405 = scalar_lea.vmem %s2, %s404
        %p406 = pneg %p104
        %p407 = pneg %p101
        %s408 = smul.u32 2, %s21
        %p409 = scmp.lt.s32.totalorder %s408, 3
        %s410 = scalar_select %p409, %s408, 3
        %s411 = smul.addr %s410, 8
        %s412 = scalar_lea.vmem %s3, %s411
        %p413 = pneg %p130
        %p414 = pneg %p127
        %s415 = sand.u32 %s143, 1
        %s416 = sand.u32 %s143, 1
        %s417 = smul.addr %s416, 8
        %s418 = scalar_lea.vmem [#allocation8], %s417
        %p419 = pneg %p156
        %p420 = pneg %p153
        %p421 = scmp.lt.s32.totalorder %s22, 1
        %s422 = scalar_select %p421, %s22, 1
        %s423 = scalar_lea.vmem %s5, %s422
        %p424 = pneg %p182
        %p425 = pneg %p179
        %p426 = pneg %p208
        %p427 = pneg %p205
        %s428 = smul.u32 2, %s21
        %p429 = scmp.lt.s32.totalorder %s428, 3
        %s430 = scalar_select %p429, %s428, 3
        %s431 = smul.addr %s430, 8
        %s432 = scalar_lea.vmem %s6, %s431
        %s433 = smul.u32 2, %s21
        %s434 = smul.u32 2, %s21
        %p435 = scmp.lt.s32.totalorder %s434, 3
        %s436 = scalar_select %p435, %s434, 3
        %s437 = smul.addr %s436, 8
        %s438 = scalar_lea.vmem %s1, %s437
        %s439 = smul.u32 2, %s21
        %s440 = smul.u32 2, %s21
        %p441 = scmp.lt.s32.totalorder %s440, 3
        %s442 = scalar_select %p441, %s440, 3
        %s443 = smul.addr %s442, 8
        %s444 = scalar_lea.vmem %s2, %s443
        %s445 = smul.u32 2, %s21
        %s446 = smul.u32 2, %s21
        %p447 = scmp.lt.s32.totalorder %s446, 3
        %s448 = scalar_select %p447, %s446, 3
        %s449 = smul.addr %s448, 8
        %s450 = scalar_lea.vmem %s3, %s449
        %s451 = smul.u32 2, %s21
        %p452 = scmp.lt.s32.totalorder %s22, 1
        %s453 = scalar_select %p452, %s22, 1
        %s454 = scalar_lea.vmem %s5, %s453
        %s455 = smul.u32 2, %s21
        %p456 = scmp.lt.s32.totalorder %s455, 3
        %s457 = scalar_select %p456, %s455, 3
        %s458 = smul.addr %s457, 8
        %s459 = scalar_lea.vmem %s6, %s458
        %s460 = smul.u32 2, %s21
        %p462 = scmp.eq.s32.totalorder %s22, 0
        // Predicated region
        $region127: #{tpu_custom_call.1} parent=117 // pred_check
          %p463 = pneg %p462
        $region128: #{tpu_custom_call.1} parent=117 // pred_check_branch
          %465 = sbr.rel (%p463) target = $region130
        $region129: #{tpu_custom_call.1} parent=117 // pred_region
          %466 = vst [vmem:[#allocation2] sm:$0xff] -inf
          %467 = vst [vmem:[#allocation2 + $0x8] sm:$0xff] -inf
          %468 = vst [vmem:[#allocation3] sm:$0xff] 0.0
          %469 = vst [vmem:[#allocation3 + $0x8] sm:$0xff] 0.0
          %470 = vst [vmem:[#allocation4] sm:$0xff] 0.0
          %471 = vst [vmem:[#allocation4 + $0x8] sm:$0xff] 0.0
          %472 = vst [vmem:[#allocation5] sm:$0xff] 0.0
          %473 = vst [vmem:[#allocation5 + $0x8] sm:$0xff] 0.0
          %v474 = vld [vmem:[%s444] sm:$0xff]
          %v475 = vld [vmem:[%s444 + $0x8] sm:$0xff]
          %v476 = vmul.f32 %v474, 1.442695
          %v477 = vpow.pop %v476
          %v478 = vmul.f32 %v475, 1.442695
          %v479 = vpow.pop %v478
          %v480 = vld [vmem:[%s450] sm:$0xff]
          %v481 = vld [vmem:[%s450 + $0x8] sm:$0xff]
          %v482 = vmul.f32 %v477, %v480
          %v483 = vmul.f32 %v479, %v481
          %v484 = vld [vmem:[%s438] sm:$0xff]
          %v485 = vld [vmem:[%s438 + $0x8] sm:$0xff]
          %v486 = vadd.f32 %v482, %v484
          %v487 = vadd.f32 %v483, %v485
          %v488 = vpack.c.bf16 %v487, %v486
          %vm489 = vcmask 130048
          %490 = vst.msk [vmem:[#allocation6] sm:$0xff] %vm489, %v488
        $region130: #{tpu_custom_call.1} parent=117 // pred_fallthru
          _
        %v491 = vld [vmem:[#allocation6] sm:$0xff]
        %v492 = vld [vmem:[%s384] sm:$0xf]
        %v493 = vld [vmem:[%s384 + $0x4] sm:$0xf]
        %v494 = vld [vmem:[%s454] sm:$0x1]
        %v496 = vlaneseq
        %v497 = vshrl.u32 %v496, 7
        %v498 = vsub.s32 0, %v497
        %v499 = vrot.slane %v494, %v498
        %v503 = vunpack.c.l.b16 %v492
        %v504 = vunpack.c.l.b16 %v493
        %v505 = vpack.c.b16 %v504, %v503
        %vm507 = vcmask 130048
        %v509 = vsel %vm507, %v491, 0
        %511 = vmatprep.subr.bf16.mxu0 0
        %512 = vmatpush1.bf16.msra.mxu0 %v505
        %513 = vmatprep.subr.bf16.mxu0 0
        %514 = vmatpush1.bf16.msra.mxu0 0
        %515 = vmatprep.subr.bf16.mxu0 0
        %516 = vmatpush1.bf16.msra.mxu0 0
        %517 = vmatprep.subr.bf16.mxu0 0
        %518 = vmatpush1.bf16.msra.mxu0 0
        %519 = vmatprep.subr.bf16.mxu0 0
        %520 = vmatpush1.bf16.msra.mxu0 0
        %521 = vmatprep.subr.bf16.mxu0 0
        %522 = vmatpush1.bf16.msra.mxu0 0
        %523 = vmatprep.subr.bf16.mxu0 0
        %524 = vmatpush1.bf16.msra.mxu0 0
        %525 = vmatprep.subr.bf16.mxu0 0
        %526 = vmatpush1.bf16.msra.mxu0 0
        %527 = vmatprep.subr.bf16.mxu0 0
        %528 = vmatpush1.bf16.msra.mxu0 0
        %529 = vmatprep.subr.bf16.mxu0 0
        %530 = vmatpush1.bf16.msra.mxu0 0
        %531 = vmatprep.subr.bf16.mxu0 0
        %532 = vmatpush1.bf16.msra.mxu0 0
        %533 = vmatprep.subr.bf16.mxu0 0
        %534 = vmatpush1.bf16.msra.mxu0 0
        %535 = vmatprep.subr.bf16.mxu0 0
        %536 = vmatpush1.bf16.msra.mxu0 0
        %537 = vmatprep.subr.bf16.mxu0 0
        %538 = vmatpush1.bf16.msra.mxu0 0
        %539 = vmatprep.subr.bf16.mxu0 0
        %540 = vmatpush1.bf16.msra.mxu0 0
        %541 = vmatprep.subr.bf16.mxu0 0
        %542 = vmatpush1.bf16.msra.mxu0 0
        %543 = vmatprep.mubr.bf16.mxu0 0
        %544 = vmatmul.mubr.bf16.gmra.mrb[0].mxu0 %v509
        %v545 = vpop.f32.mrb[0].mxu0
        %v546 = vadd.f32 %v499, %v545
        %v547 = vpop.f32.mrb[0].mxu0
        %v548 = vpop.f32.mrb[0].mxu0
        %v549 = vadd.f32 %v499, %v548
        %v550 = vpop.f32.mrb[0].mxu0
        %551 = vdwg.mxu0
        %v552 = vld [vmem:[%s377] sm:$0xf]
        %v553 = vld [vmem:[%s377 + $0x4] sm:$0xf]
        %v554 = vunpack.c.l.bf16 %v552
        %v555 = vunpack.c.l.bf16 %v553
        %v556 = vld [vmem:[#allocation2] sm:$0xff]
        %v557 = vld [vmem:[#allocation2 + $0x8] sm:$0xff]
        %v558 = vmax.f32 %v556, %v546
        %v559 = vmax.f32 %v557, %v549
        %v560 = vsub.f32 %v556, %v558
        %v561 = vsub.f32 %v557, %v559
        %v562 = vmul.f32 %v560, 1.442695
        %v563 = vpow.pop %v562
        %v564 = vmul.f32 %v561, 1.442695
        %v565 = vpow.pop %v564
        %v566 = vld [vmem:[#allocation3] sm:$0xff]
        %v567 = vld [vmem:[#allocation3 + $0x8] sm:$0xff]
        %v568 = vmul.f32 %v563, %v566
        %v569 = vmul.f32 %v565, %v567
        %v570 = vsub.f32 %v546, %v558
        %v571 = vsub.f32 %v549, %v559
        %v572 = vmul.f32 %v570, 1.442695
        %v573 = vpow.pop %v572
        %v574 = vmul.f32 %v571, 1.442695
        %v575 = vpow.pop %v574
        %v576 = vadd.f32 %v568, %v573
        %v577 = vadd.f32 %v569, %v575
        %578 = vst [vmem:[#allocation3] sm:$0xff] %v576
        %579 = vst [vmem:[#allocation3 + $0x8] sm:$0xff] %v577
        %580 = vst [vmem:[#allocation2] sm:$0xff] %v558
        %581 = vst [vmem:[#allocation2 + $0x8] sm:$0xff] %v559
        %v582 = vld [vmem:[#allocation4] sm:$0xff]
        %v583 = vld [vmem:[#allocation4 + $0x8] sm:$0xff]
        %v584 = vmul.f32 %v546, %v554
        %v585 = vmul.f32 %v549, %v555
        %v586 = vadd.f32 %v582, %v584
        %v587 = vadd.f32 %v583, %v585
        %588 = vst [vmem:[#allocation4] sm:$0xff] %v586
        %589 = vst [vmem:[#allocation4 + $0x8] sm:$0xff] %v587
        %v590 = vld [vmem:[#allocation5] sm:$0xff]
        %v591 = vld [vmem:[#allocation5 + $0x8] sm:$0xff]
        %v592 = vadd.f32 %v590, %v554
        %v593 = vadd.f32 %v591, %v555
        %594 = vst [vmem:[#allocation5] sm:$0xff] %v592
        %595 = vst [vmem:[#allocation5 + $0x8] sm:$0xff] %v593
        %p596 = scmp.eq.s32.totalorder %s22, 1
        // Predicated region
        $region131: #{tpu_custom_call.1} parent=117 // pred_check
          %p597 = pneg %p596
        $region132: #{tpu_custom_call.1} parent=117 // pred_check_branch
          %599 = sbr.rel (%p597) target = $region134
        $region133: #{tpu_custom_call.1} parent=117 // pred_region
          %v600 = vld [vmem:[#allocation2] sm:$0xff]
          %v601 = vld [vmem:[#allocation2 + $0x8] sm:$0xff]
          %602 = vmax.xlane.f32.xlu0 %v600
          %v603 = vpop.xlane.xlu0 %602
          %604 = vmax.xlane.f32.xlu0 %v601
          %v605 = vpop.xlane.xlu0 %604
          %v606 = vld [vmem:[#allocation3] sm:$0xff]
          %v607 = vld [vmem:[#allocation3 + $0x8] sm:$0xff]
          %v608 = vsub.f32 %v600, %v603
          %v609 = vsub.f32 %v601, %v605
          %v610 = vmul.f32 %v608, 1.442695
          %v611 = vpow.pop %v610
          %v612 = vmul.f32 %v609, 1.442695
          %v613 = vpow.pop %v612
          %v614 = vmul.f32 %v606, %v611
          %v615 = vmul.f32 %v607, %v613
          %616 = vadd.xlane.f32.xlu0 %v614
          %v617 = vpop.xlane.xlu0 %616
          %618 = vadd.xlane.f32.xlu0 %v615
          %v619 = vpop.xlane.xlu0 %618
          %v620 = vlog2.pop %v617
          %v621 = vmul.f32 %v620, 0.6931472
          %v622 = vlog2.pop %v619
          %v623 = vmul.f32 %v622, 0.6931472
          %v624 = vadd.f32 %v603, %v621
          %v625 = vadd.f32 %v605, %v623
          %v626 = vld [vmem:[#allocation5] sm:$0xff]
          %v627 = vld [vmem:[#allocation5 + $0x8] sm:$0xff]
          %628 = vadd.xlane.f32.xlu0 %v626
          %v629 = vpop.xlane.xlu0 %628
          %630 = vadd.xlane.f32.xlu0 %v627
          %v631 = vpop.xlane.xlu0 %630
          %v632 = vld [vmem:[#allocation4] sm:$0xff]
          %v633 = vld [vmem:[#allocation4 + $0x8] sm:$0xff]
          %634 = vadd.xlane.f32.xlu0 %v632
          %v635 = vpop.xlane.xlu0 %634
          %636 = vadd.xlane.f32.xlu0 %v633
          %v637 = vpop.xlane.xlu0 %636
          %v638 = vmul.f32 %v624, %v629
          %v639 = vmul.f32 %v625, %v631
          %v640 = vsub.f32 %v638, %v635
          %v641 = vsub.f32 %v639, %v637
          %vm642 = vcmask 7168
          %643 = vst.msk [vmem:[%s459] sm:$0xff] %vm642, %v640
          %644 = vst.msk [vmem:[%s459 + $0x8] sm:$0xff] %vm642, %v641
        $region134: #{tpu_custom_call.1} parent=117 // pred_fallthru
          _
        %s645 = smul.u32 2, %s21
        %p646 = scmp.lt.s32.totalorder %s645, 3
        %s647 = scalar_select %p646, %s645, 3
        %s648 = smul.addr %s647, 8
        %s649 = scalar_lea.vmem %s6, %s648
        // Predicated region
        $region135: #{tpu_custom_call.1} parent=117 // pred_check
          %p650 = pneg %p205
        $region136: #{tpu_custom_call.1} parent=117 // pred_check_branch
          %652 = sbr.rel (%p650) target = $region138
        $region137: #{tpu_custom_call.1} parent=117 // pred_region
          %s653 = smul.u32 2, %s21
        $region138: #{tpu_custom_call.1} parent=117 // pred_fallthru
          _
      $region118: #{tpu_custom_call.1} parent=5 // pred_fallthru
        _
      %p654 = scmp.le.s32.totalorder 2, %s12
      // Predicated region
      $region139: #{tpu_custom_call.1} parent=5 // pred_check
        %p655 = pneg %p654
      $region140: #{tpu_custom_call.1} parent=5 // pred_check_branch
        %657 = sbr.rel (%p655) target = $region142
      $region141: #{tpu_custom_call.1} parent=5 // pred_region
        %s658 = ssub.s32 %s12, 2
        // Predicated region
        $region143: #{tpu_custom_call.1} parent=141 // pred_check
          %p659 = pneg %p211
        $region144: #{tpu_custom_call.1} parent=141 // pred_check_branch
          %661 = sbr.rel (%p659) target = $region146
        $region145: #{tpu_custom_call.1} parent=141 // pred_region
          %s662 = smul.u32 2, %s23
          %p663 = scmp.lt.s32.totalorder %s662, 3
          %s664 = scalar_select %p663, %s662, 3
          %s665 = smul.addr %s664, 8
          %s666 = scalar_lea.vmem %s6, %s665
        $region146: #{tpu_custom_call.1} parent=141 // pred_fallthru
          _
      $region142: #{tpu_custom_call.1} parent=5 // pred_fallthru
        _
    $region6: #{tpu_custom_call.1} parent=1 // loop_footer
      %s16 = sadd.s32 1, %s12
    $region7: #{tpu_custom_call.1} parent=1 // loop_footer_branch
      %11 = sbr.rel target = $region3
    $region8: #{tpu_custom_call.1} parent=1 // loop_exit
      _

</llo_original>
